<compile_context>
chip_gen: v6e
topology: v6e:2x2x1
jax: 0.10.0
libtpu: 0.0.40
codegen_flags: <defaults>
</compile_context>

<pallas_src>
import functools
import math

import jax
import jax.numpy as jnp
from jax.experimental import pallas as pl
from jax.experimental.pallas import tpu as pltpu


def _round_up(x: int, m: int) -> int:
    return ((x + m - 1) // m) * m


def _kernel(t_ref, f_ref, p_ref, m_ref, out_ref):
    # t_ref:   [TB, 1]    per-row time
    # f_ref:   [1, dim]   duplicated frequencies (0 in the odd-dim pad column)
    # p_ref:   [1, dim]   phase: 0 for the cos half, -pi/2 for the sin half
    # m_ref:   [1, dim]   1 everywhere, 0 in the odd-dim pad column
    # out_ref: [TB, dim]
    # One full-width (lane-dense) store; sin(x) == cos(x - pi/2).
    out_ref[...] = jnp.cos(t_ref[...] * f_ref[...] + p_ref[...]) * m_ref[...]


def _choose_row_tile(batch: int, dim: int) -> int:
    """Rows per tile, multiple of 8.

    Budgets ~4 MiB of output per tile and keeps the double-buffered
    (output tile + [TB,1] time tile) footprint under ~16 MiB; the [TB,1]
    f32 block really occupies TB/8 x 4 KiB in VMEM (lane padding).
    """
    out_row_bytes = max(dim * 4, 4)
    t_row_bytes = 512  # (8,1) f32 sub-tile pads to a full 4 KiB vreg row
    rows = min((4 << 20) // out_row_bytes,
               (8 << 20) // (out_row_bytes + t_row_bytes))
    rows = max(8, min(8192, (rows // 8) * 8))
    if batch > 16:
        # Megacore (v7x, 2 TCs): make sure the "parallel" grid axis has >= 2
        # steps so the second core is not idle.
        rows = min(rows, _round_up(-(-batch // 2), 8))
    return min(rows, _round_up(batch, 8))


@functools.partial(jax.jit, static_argnames=("dim", "max_period"))
def sinusoidal_time_embedding(t: jax.Array, dim: int,
                              max_period: float = 10.0) -> jax.Array:
    """Pallas TPU implementation of SinusoidalTimeEmbedding.forward."""
    if t.ndim == 1:
        t = t[:, None]
    t = t.astype(jnp.float32)
    B = t.shape[0]
    half = dim // 2

    if half == 0:
        # dim <= 1: cos/sin halves are empty -> result is just the zero pad.
        return jnp.zeros((B, dim), jnp.float32)

    pad = dim - 2 * half  # 0 or 1

    # Resident [1, dim] constants (constant index_map -> stay in VMEM across
    # grid steps): duplicated freqs, cos/sin phase, and pad-column mask.
    freqs = jnp.exp(
        -math.log(max_period)
        * jnp.arange(half, dtype=jnp.float32) / float(half))
    zpad = jnp.zeros((pad,), jnp.float32)
    f_full = jnp.concatenate([freqs, freqs, zpad])[None, :]                 # [1, dim]
    phase = jnp.concatenate([jnp.zeros((half,), jnp.float32),
                             jnp.full((half,), -0.5 * math.pi, jnp.float32),
                             zpad])[None, :]                                # [1, dim]
    mask = jnp.concatenate([jnp.ones((2 * half,), jnp.float32),
                            zpad])[None, :]                                 # [1, dim]

    TB = _choose_row_tile(B, dim)
    num_blocks = -(-B // TB)

    # Pad only the tiny (B, 1) time vector so in-kernel values in the ragged
    # last block are deterministic. The output is NOT padded and NOT sliced:
    # Pallas clips the partially-out-of-bounds last output block on writeback.
    B_pad_t = num_blocks * TB
    if B_pad_t != B:
        t = jnp.pad(t, ((0, B_pad_t - B), (0, 0)))

    out = pl.pallas_call(
        _kernel,
        out_shape=jax.ShapeDtypeStruct((B, dim), jnp.float32),
        grid=(num_blocks,),
        in_specs=[
            pl.BlockSpec((TB, 1), lambda i: (i, 0)),     # per-tile times
            pl.BlockSpec((1, dim), lambda i: (0, 0)),    # resident freqs
            pl.BlockSpec((1, dim), lambda i: (0, 0)),    # resident phase
            pl.BlockSpec((1, dim), lambda i: (0, 0)),    # resident mask
        ],
        out_specs=pl.BlockSpec((TB, dim), lambda i: (i, 0)),
        compiler_params=pltpu.CompilerParams(
            dimension_semantics=("parallel",),
            vmem_limit_bytes=32 * 1024 * 1024),
    )(t, f_full, phase, mask)

    return out


def _reference(t, dim, max_period=10.0):
    """Pure-JAX mirror of the PyTorch module, for sanity checking."""
    if t.ndim == 1:
        t = t[:, None]
    half = dim // 2
    freqs = jnp.exp(
        -math.log(max_period)
        * jnp.arange(half, dtype=jnp.float32) / max(half, 1))
    args = t.astype(jnp.float32) * freqs
    emb = jnp.concatenate([jnp.cos(args), jnp.sin(args)], axis=-1)
    if dim % 2 == 1:
        emb = jnp.pad(emb, ((0, 0), (0, 1)))
    return emb


if __name__ == "__main__":
    key = jax.random.PRNGKey(0)
    k1, k2, k3 = jax.random.split(key, 3)

    # Case 1: even lane-friendly dim, [B, 1] input (module's primary path);
    # batch large enough to exercise a 2-step "parallel" grid.
    B1, dim1 = 64, 128
    t1 = jax.random.uniform(k1, (B1, 1), dtype=jnp.float32) * 5.0
    emb1 = jax.block_until_ready(sinusoidal_time_embedding(t1, dim=dim1))
    ref1 = _reference(t1, dim1)
    assert emb1.shape == (B1, dim1), emb1.shape
    assert jnp.allclose(emb1, ref1, atol=2e-5, rtol=1e-5), "even-dim mismatch"

    # Case 2: odd dim, 1-D input, batch not a multiple of the row tile
    # (exercises ragged last block + folded zero pad column).
    B2, dim2 = 37, 33
    t2 = jax.random.uniform(k2, (B2,), dtype=jnp.float32) * 5.0
    emb2 = jax.block_until_ready(sinusoidal_time_embedding(t2, dim=dim2))
    ref2 = _reference(t2, dim2)
    assert emb2.shape == (B2, dim2), emb2.shape
    assert jnp.allclose(emb2, ref2, atol=2e-5, rtol=1e-5), "odd-dim mismatch"
    assert jnp.all(emb2[:, -1] == 0.0), "odd-dim pad column must be exactly 0"

    # Case 3: tiny batch / small dim (masked-lane path; see TODO about fusing).
    B3, dim3 = 2, 32
    t3 = jax.random.uniform(k3, (B3, 1), dtype=jnp.float32) * 5.0
    emb3 = jax.block_until_ready(sinusoidal_time_embedding(t3, dim=dim3))
    ref3 = _reference(t3, dim3)
    assert emb3.shape == (B3, dim3), emb3.shape
    assert jnp.allclose(emb3, ref3, atol=2e-5, rtol=1e-5), "small-dim mismatch"

    print("KERNEL_OK")
</pallas_src>

<mosaic_0001>
module attributes {stable_mosaic.version = 11 : i64} {
  func.func @_kernel(%arg0: i32, %arg1: memref<32x1xf32, #tpu.memory_space<vmem>>, %arg2: memref<1x128xf32, #tpu.memory_space<vmem>>, %arg3: memref<1x128xf32, #tpu.memory_space<vmem>>, %arg4: memref<1x128xf32, #tpu.memory_space<vmem>>, %arg5: memref<32x128xf32, #tpu.memory_space<vmem>>) attributes {dimension_semantics = [#tpu.dimension_semantics<parallel>], iteration_bounds = array<i64: 2>, scalar_prefetch = 0 : i64, scratch_operands = 0 : i64, tpu.core_type = #tpu.core_type<tc>, window_params = [{transform_indices = @transform_0, window_bounds = array<i64: 32, 1>}, {pipeline_mode = #tpu.pipeline_mode<synchronous>, transform_indices = @transform_1, window_bounds = array<i64: 1, 128>}, {pipeline_mode = #tpu.pipeline_mode<synchronous>, transform_indices = @transform_2, window_bounds = array<i64: 1, 128>}, {pipeline_mode = #tpu.pipeline_mode<synchronous>, transform_indices = @transform_3, window_bounds = array<i64: 1, 128>}, {transform_indices = @transform_4, window_bounds = array<i64: 32, 128>}]} {
    %c0 = arith.constant 0 : index
    %c0_0 = arith.constant 0 : index
    %0 = vector.load %arg1[%c0, %c0_0] : memref<32x1xf32, #tpu.memory_space<vmem>>, vector<32x1xf32>
    %c0_1 = arith.constant 0 : index
    %c0_2 = arith.constant 0 : index
    %1 = vector.load %arg2[%c0_1, %c0_2] : memref<1x128xf32, #tpu.memory_space<vmem>>, vector<1x128xf32>
    %2 = vector.broadcast %0 : vector<32x1xf32> to vector<32x128xf32>
    %3 = vector.broadcast %1 : vector<1x128xf32> to vector<32x128xf32>
    %4 = arith.mulf %2, %3 : vector<32x128xf32>
    %c0_3 = arith.constant 0 : index
    %c0_4 = arith.constant 0 : index
    %5 = vector.load %arg3[%c0_3, %c0_4] : memref<1x128xf32, #tpu.memory_space<vmem>>, vector<1x128xf32>
    %6 = vector.broadcast %5 : vector<1x128xf32> to vector<32x128xf32>
    %7 = arith.addf %4, %6 : vector<32x128xf32>
    %8 = math.cos %7 : vector<32x128xf32>
    %c0_5 = arith.constant 0 : index
    %c0_6 = arith.constant 0 : index
    %9 = vector.load %arg4[%c0_5, %c0_6] : memref<1x128xf32, #tpu.memory_space<vmem>>, vector<1x128xf32>
    %10 = vector.broadcast %9 : vector<1x128xf32> to vector<32x128xf32>
    %11 = arith.mulf %8, %10 : vector<32x128xf32>
    %c0_7 = arith.constant 0 : index
    %c0_8 = arith.constant 0 : index
    %12 = vector.load %arg5[%c0_7, %c0_8] : memref<32x128xf32, #tpu.memory_space<vmem>>, vector<32x128xf32>
    tpu.vector_store %arg5[%c0_7, %c0_8], %11 {strides = array<i32>} : memref<32x128xf32, #tpu.memory_space<vmem>>, vector<32x128xf32>,
    return
  }
  func.func @transform_0(%arg0: i32) -> (i32, i32) {
    %c0_i32 = arith.constant 0 : i32
    %c0_i32_0 = arith.constant 0 : i32
    return %arg0, %c0_i32 : i32, i32
  }
  func.func @transform_1(%arg0: i32) -> (i32, i32) {
    %c0_i32 = arith.constant 0 : i32
    %c0_i32_0 = arith.constant 0 : i32
    %c0_i32_1 = arith.constant 0 : i32
    return %c0_i32, %c0_i32_0 : i32, i32
  }
  func.func @transform_2(%arg0: i32) -> (i32, i32) {
    %c0_i32 = arith.constant 0 : i32
    %c0_i32_0 = arith.constant 0 : i32
    %c0_i32_1 = arith.constant 0 : i32
    return %c0_i32, %c0_i32_0 : i32, i32
  }
  func.func @transform_3(%arg0: i32) -> (i32, i32) {
    %c0_i32 = arith.constant 0 : i32
    %c0_i32_0 = arith.constant 0 : i32
    %c0_i32_1 = arith.constant 0 : i32
    return %c0_i32, %c0_i32_0 : i32, i32
  }
  func.func @transform_4(%arg0: i32) -> (i32, i32) {
    %c0_i32 = arith.constant 0 : i32
    %c0_i32_0 = arith.constant 0 : i32
    return %arg0, %c0_i32 : i32, i32
  }
}

</mosaic_0001>

<llo_original>
// kernel: sinusoidal_time_embedding.1
$region0: #{sinusoidal_time_embedding.1}
  #allocation0 [shape = 'u32[]', space=smem, size = 0x4, offset = 0x4, fixed_abs, tag = 'smem constant byte address 0x4 - core index']
  #allocation1 [shape = 'u32[144,128]{1,0:T(1,128)}', space=vmem, size = 0x12000, scoped, tag = 'internal scratch']
  %s0 = inlined_call_operand.vmem [shape: f32[64,1], index: 0, kind: input, shape index: {}]
  %s1 = inlined_call_operand.vmem [shape: f32[1,128], index: 1, kind: input, shape index: {}]
  %s2 = inlined_call_operand.vmem [shape: f32[1,128], index: 2, kind: input, shape index: {}]
  %s3 = inlined_call_operand.vmem [shape: f32[1,128], index: 3, kind: input, shape index: {}]
  %s4 = inlined_call_operand.hbm [shape: f32[64,128], index: 4, kind: output, shape index: {}]
  %s5 = sld [smem:[#allocation0]]
  $region49: #{sinusoidal_time_embedding.1} parent=0
    _
  %s7 = ssub.s32 1, %s5
  %s8 = scalar_select 0, %s7, %s5
  $region1: #{sinusoidal_time_embedding.1} parent=0
    #allocation2 [shape = 'u8[32768]{0}', space=vmem, size = 0x8000, scoped, tag = 'output window, operand 0']
    #allocation3 [shape = 's32[2]{0}', space=sflag, size = 0x8, scoped, tag = 'scoped memory for sinusoidal_time_embedding.1']
    %9 = vsyncpa [#allocation3], 0
    %s10 = scalar_lea.sflag [#allocation3], 1
    %11 = vsyncpa %s10, 0
    loop: start=0, step=1, limit=4
    $region2: #{sinusoidal_time_embedding.1} parent=1 // loop_pre_header
      _
    $region3: #{sinusoidal_time_embedding.1} parent=1 // loop_header
      %s13 = sphi 0, %s17
      %p14 = scmp.ge.s32.totalorder %s13, 4
      %s23 = sphi 0, %s25
      %s26 = sphi 0, %s23
      %s27 = sphi 0, %s26
      %s43 = sphi 0, %s27
      %s47 = sphi 0, %s47
      %s49 = sphi 0, %s47
      %s50 = sphi 0, %s49
      %s64 = sphi 0, %s50
      %s68 = sphi 0, %s68
      %s70 = sphi 0, %s68
      %s71 = sphi 0, %s70
      %s85 = sphi 0, %s71
      %s89 = sphi 0, %s89
      %s91 = sphi 0, %s89
      %s92 = sphi 0, %s91
      %s106 = sphi 0, %s92
      %s112 = sphi 0, %s114
      %s115 = sphi 0, %s112
      %s116 = sphi 0, %s115
      %s132 = sphi 0, %s116
    $region4: #{sinusoidal_time_embedding.1} parent=1 // loop_header_branch
      %16 = sbr.rel (%p14) target = $region8
    $region5: #{sinusoidal_time_embedding.1} parent=1 // loop_body
      %s18 = ssub.s32 %s13, 1
      %s19 = ssub.s32 %s13, 2
      %s20 = sadd.s32 %s13, 1
      %s21 = ssub.s32 %s13, %s20
      %p22 = scmp.eq.s32.totalorder %s21, 0
      %s24 = sadd.s32 %s23, 1
      %s25 = scalar_select %p22, %s23, %s24
      %p28 = pneg %p22
      %p29 = scmp.eq.s32.totalorder %s13, 1
      %p30 = por %p28, %p29
      %p31 = scmp.ne.s32.totalorder %s23, %s26
      %p32 = scmp.eq.s32.totalorder %s13, 0
      %p33 = por %p31, %p32
      %p34 = scmp.ne.s32.totalorder %s23, %s26
      %p35 = scmp.eq.s32.totalorder %s18, 1
      %p36 = por %p34, %p35
      %p37 = scmp.ne.s32.totalorder %s26, %s27
      %p38 = scmp.eq.s32.totalorder %s18, 0
      %p39 = por %p37, %p38
      %p40 = scmp.ne.s32.totalorder %s26, %s27
      %p41 = scmp.eq.s32.totalorder %s19, 1
      %p42 = por %p40, %p41
      %p44 = scmp.ne.s32.totalorder %s27, %s43
      %p45 = scmp.eq.s32.totalorder %s19, 0
      %p46 = por %p44, %p45
      %s48 = sadd.s32 %s47, 1
      %p51 = scmp.eq.s32.totalorder %s13, 1
      %p52 = scmp.ne.s32.totalorder %s47, %s49
      %p53 = scmp.eq.s32.totalorder %s13, 0
      %p54 = por %p52, %p53
      %p55 = scmp.ne.s32.totalorder %s47, %s49
      %p56 = scmp.eq.s32.totalorder %s18, 1
      %p57 = por %p55, %p56
      %p58 = scmp.ne.s32.totalorder %s49, %s50
      %p59 = scmp.eq.s32.totalorder %s18, 0
      %p60 = por %p58, %p59
      %p61 = scmp.ne.s32.totalorder %s49, %s50
      %p62 = scmp.eq.s32.totalorder %s19, 1
      %p63 = por %p61, %p62
      %p65 = scmp.ne.s32.totalorder %s50, %s64
      %p66 = scmp.eq.s32.totalorder %s19, 0
      %p67 = por %p65, %p66
      %s69 = sadd.s32 %s68, 1
      %p72 = scmp.eq.s32.totalorder %s13, 1
      %p73 = scmp.ne.s32.totalorder %s68, %s70
      %p74 = scmp.eq.s32.totalorder %s13, 0
      %p75 = por %p73, %p74
      %p76 = scmp.ne.s32.totalorder %s68, %s70
      %p77 = scmp.eq.s32.totalorder %s18, 1
      %p78 = por %p76, %p77
      %p79 = scmp.ne.s32.totalorder %s70, %s71
      %p80 = scmp.eq.s32.totalorder %s18, 0
      %p81 = por %p79, %p80
      %p82 = scmp.ne.s32.totalorder %s70, %s71
      %p83 = scmp.eq.s32.totalorder %s19, 1
      %p84 = por %p82, %p83
      %p86 = scmp.ne.s32.totalorder %s71, %s85
      %p87 = scmp.eq.s32.totalorder %s19, 0
      %p88 = por %p86, %p87
      %s90 = sadd.s32 %s89, 1
      %p93 = scmp.eq.s32.totalorder %s13, 1
      %p94 = scmp.ne.s32.totalorder %s89, %s91
      %p95 = scmp.eq.s32.totalorder %s13, 0
      %p96 = por %p94, %p95
      %p97 = scmp.ne.s32.totalorder %s89, %s91
      %p98 = scmp.eq.s32.totalorder %s18, 1
      %p99 = por %p97, %p98
      %p100 = scmp.ne.s32.totalorder %s91, %s92
      %p101 = scmp.eq.s32.totalorder %s18, 0
      %p102 = por %p100, %p101
      %p103 = scmp.ne.s32.totalorder %s91, %s92
      %p104 = scmp.eq.s32.totalorder %s19, 1
      %p105 = por %p103, %p104
      %p107 = scmp.ne.s32.totalorder %s92, %s106
      %p108 = scmp.eq.s32.totalorder %s19, 0
      %p109 = por %p107, %p108
      %s110 = ssub.s32 %s13, %s20
      %p111 = scmp.eq.s32.totalorder %s110, 0
      %s113 = sadd.s32 %s112, 1
      %s114 = scalar_select %p111, %s112, %s113
      %p117 = pneg %p111
      %p118 = scmp.eq.s32.totalorder %s13, 1
      %p119 = por %p117, %p118
      %p120 = scmp.ne.s32.totalorder %s112, %s115
      %p121 = scmp.eq.s32.totalorder %s13, 0
      %p122 = por %p120, %p121
      %p123 = scmp.ne.s32.totalorder %s112, %s115
      %p124 = scmp.eq.s32.totalorder %s18, 1
      %p125 = por %p123, %p124
      %p126 = scmp.ne.s32.totalorder %s115, %s116
      %p127 = scmp.eq.s32.totalorder %s18, 0
      %p128 = por %p126, %p127
      %p129 = scmp.ne.s32.totalorder %s115, %s116
      %p130 = scmp.eq.s32.totalorder %s19, 1
      %p131 = por %p129, %p130
      %p133 = scmp.ne.s32.totalorder %s116, %s132
      %p134 = scmp.eq.s32.totalorder %s19, 0
      %p135 = por %p133, %p134
      %p136 = scmp.le.s32.totalorder 1, %s13
      %p137 = scmp.lt.s32.totalorder %s13, 3
      %p138 = pnand %p136, %p137
      %p139 = pneg %p138
      // Predicated region
      $region9: #{sinusoidal_time_embedding.1} parent=5 // pred_check
        _
      $region10: #{sinusoidal_time_embedding.1} parent=5 // pred_check_branch
        %141 = sbr.rel (%p138) target = $region12
      $region11: #{sinusoidal_time_embedding.1} parent=5 // pred_region
        %s142 = ssub.s32 %s13, 1
        // Predicated region
        $region13: #{sinusoidal_time_embedding.1} parent=11 // pred_check
          %p143 = pneg %p60
        $region14: #{sinusoidal_time_embedding.1} parent=11 // pred_check_branch
          %145 = sbr.rel (%p143) target = $region16
        $region15: #{sinusoidal_time_embedding.1} parent=11 // pred_region
          _
        $region16: #{sinusoidal_time_embedding.1} parent=11 // pred_fallthru
          _
        // Predicated region
        $region17: #{sinusoidal_time_embedding.1} parent=11 // pred_check
          %p146 = pneg %p81
        $region18: #{sinusoidal_time_embedding.1} parent=11 // pred_check_branch
          %148 = sbr.rel (%p146) target = $region20
        $region19: #{sinusoidal_time_embedding.1} parent=11 // pred_region
          _
        $region20: #{sinusoidal_time_embedding.1} parent=11 // pred_fallthru
          _
        // Predicated region
        $region21: #{sinusoidal_time_embedding.1} parent=11 // pred_check
          %p149 = pneg %p102
        $region22: #{sinusoidal_time_embedding.1} parent=11 // pred_check_branch
          %151 = sbr.rel (%p149) target = $region24
        $region23: #{sinusoidal_time_embedding.1} parent=11 // pred_region
          _
        $region24: #{sinusoidal_time_embedding.1} parent=11 // pred_fallthru
          _
      $region12: #{sinusoidal_time_embedding.1} parent=5 // pred_fallthru
        _
      %p152 = scmp.lt.s32.totalorder %s13, 2
      // Predicated region
      $region25: #{sinusoidal_time_embedding.1} parent=5 // pred_check
        %p153 = pneg %p152
      $region26: #{sinusoidal_time_embedding.1} parent=5 // pred_check_branch
        %155 = sbr.rel (%p153) target = $region28
      $region27: #{sinusoidal_time_embedding.1} parent=5 // pred_region
        // Predicated region
        $region29: #{sinusoidal_time_embedding.1} parent=27 // pred_check
          %p156 = pneg %p33
        $region30: #{sinusoidal_time_embedding.1} parent=27 // pred_check_branch
          %158 = sbr.rel (%p156) target = $region32
        $region31: #{sinusoidal_time_embedding.1} parent=27 // pred_region
          %s159 = smul.u32 4, %s13
          %p160 = scmp.lt.s32.totalorder %s159, 7
          %s161 = scalar_select %p160, %s159, 7
          %s162 = smul.addr %s161, 8
          %s163 = scalar_lea.vmem %s0, %s162
          %s164 = smul.u32 4, %s13
        $region32: #{sinusoidal_time_embedding.1} parent=27 // pred_fallthru
          _
      $region28: #{sinusoidal_time_embedding.1} parent=5 // pred_fallthru
        _
      %p165 = scmp.le.s32.totalorder 1, %s13
      %p166 = scmp.lt.s32.totalorder %s13, 3
      %p167 = pnand %p165, %p166
      %p168 = pneg %p167
      // Predicated region
      $region33: #{sinusoidal_time_embedding.1} parent=5 // pred_check
        _
      $region34: #{sinusoidal_time_embedding.1} parent=5 // pred_check_branch
        %170 = sbr.rel (%p167) target = $region36
      $region35: #{sinusoidal_time_embedding.1} parent=5 // pred_region
        %s171 = ssub.s32 %s13, 1
        %s172 = smul.u32 4, %s18
        %p173 = scmp.lt.s32.totalorder %s172, 7
        %s174 = scalar_select %p173, %s172, 7
        %s175 = smul.addr %s174, 8
        %s176 = scalar_lea.vmem %s0, %s175
        %p177 = pneg %p39
        %p178 = pneg %p36
        %p179 = pneg %p60
        %p180 = pneg %p57
        %p181 = pneg %p81
        %p182 = pneg %p78
        %p183 = pneg %p102
        %p184 = pneg %p99
        %p185 = pneg %p128
        %p186 = pneg %p125
        %s187 = sand.u32 %s115, 1
        %s188 = scalar_lea.sflag [#allocation3], %s187
        %s189 = sand.u32 %s115, 1
        %s190 = smul.addr %s189, 32
        %s191 = scalar_lea.vmem [#allocation2], %s190
        %s192 = smul.u32 4, %s18
        %p193 = scmp.lt.s32.totalorder %s192, 7
        %s194 = scalar_select %p193, %s192, 7
        %s195 = smul.addr %s194, 8
        %s196 = scalar_lea.vmem %s0, %s195
        %s197 = smul.u32 4, %s18
        %s198 = smul.u32 4, %s18
        %v199 = vld [vmem:[%s196] sm:$0xff]
        %v200 = vld [vmem:[%s196 + $0x8] sm:$0xff]
        %v201 = vld [vmem:[%s196 + $0x10] sm:$0xff]
        %v202 = vld [vmem:[%s196 + $0x18] sm:$0xff]
        %v203 = vld [vmem:[%s1] sm:$0x1]
        %205 = vset.pattern.permute.xlu0 0
        %206 = vperm.xlu0 %205, %v199
        %v207 = vpop.permute.xlu0 %206
        %210 = vset.pattern.permute.xlu0 0
        %211 = vperm.xlu0 %210, %v200
        %v212 = vpop.permute.xlu0 %211
        %215 = vset.pattern.permute.xlu0 0
        %216 = vperm.xlu0 %215, %v201
        %v217 = vpop.permute.xlu0 %216
        %220 = vset.pattern.permute.xlu0 0
        %221 = vperm.xlu0 %220, %v202
        %v222 = vpop.permute.xlu0 %221
        %v225 = vlaneseq
        %v226 = vshrl.u32 %v225, 7
        %v227 = vsub.s32 0, %v226
        %v228 = vrot.slane %v203, %v227
        %v230 = vmul.f32 %v207, %v228
        %v231 = vmul.f32 %v212, %v228
        %v232 = vmul.f32 %v217, %v228
        %v233 = vmul.f32 %v222, %v228
        %v234 = vld [vmem:[%s2] sm:$0x1]
        %v236 = vlaneseq
        %v237 = vshrl.u32 %v236, 7
        %v238 = vsub.s32 0, %v237
        %v239 = vrot.slane %v234, %v238
        %v241 = vadd.f32 %v230, %v239
        %v242 = vadd.f32 %v231, %v239
        %v243 = vadd.f32 %v232, %v239
        %v244 = vadd.f32 %v233, %v239
        %v245 = vand.u32 2147483647, %v241
        %vm246 = vcmp.le.f32.partialorder %v245, 0.7853982
        %vm247 = vcmp.lt.s32.totalorder %v241, 0
        %v248 = vand.u32 %v241, 2139095040
        %v249 = vshrl.u32 %v248, 23
        %v250 = vsub.s32 %v249, 127
        %v251 = vand.u32 2147483647, %v241
        %v252 = vand.u32 %v251, 8388607
        %v253 = vor.u32 %v252, 8388608
        %v254 = vsub.s32 0, %v253
        %v255 = vadd.s32 %v250, 1
        %vm256 = vcmp.gt.s32.totalorder %v255, 0
        %v257 = vsel %vm256, %v255, 0
        %v258 = vshrl.u32 %v257, 5
        %v259 = vand.u32 %v257, 31
        %v260 = vsub.s32 32, %v259
        %v261 = vshrl.u32 683565275, %v260
        %v262 = vshll.u32 683565275, %v259
        %v263 = vshrl.u32 2475754826, %v260
        %v264 = vor.u32 %v262, %v263
        %v265 = vshll.u32 2475754826, %v259
        %v266 = vshrl.u32 2131351028, %v260
        %v267 = vor.u32 %v265, %v266
        %v268 = vshll.u32 2131351028, %v259
        %v269 = vshrl.u32 2102212464, %v260
        %v270 = vor.u32 %v268, %v269
        %v271 = vshll.u32 2102212464, %v259
        %v272 = vshrl.u32 920167782, %v260
        %v273 = vor.u32 %v271, %v272
        %v274 = vshll.u32 920167782, %v259
        %v275 = vshrl.u32 1326507024, %v260
        %v276 = vor.u32 %v274, %v275
        %vm277 = vcmp.lt.s32.totalorder %v258, 1
        %vm278 = vcmp.lt.s32.totalorder %v258, 2
        %vm279 = vcmp.lt.s32.totalorder %v258, 3
        %vm280 = vcmp.lt.s32.totalorder %v258, 4
        %v281 = vsel %vm277, %v261, %v264
        %v282 = vsel %vm280, %v270, 2102212464
        %v283 = vsel %vm279, %v267, %v282
        %v284 = vsel %vm278, %v281, %v283
        %v285 = vsel %vm277, %v264, %v267
        %v286 = vsel %vm280, %v273, 920167782
        %v287 = vsel %vm279, %v270, %v286
        %v288 = vsel %vm278, %v285, %v287
        %v289 = vsel %vm277, %v267, %v270
        %v290 = vsel %vm280, %v276, 1326507024
        %v291 = vsel %vm279, %v273, %v290
        %v292 = vsel %vm278, %v289, %v291
        %v293 = vshll.u32 %v253, 8
        %v294 = vmul.u32.u64.compose %v293, %v292
        %v295 = vextract.low.u32 %v294
        %v296 = vextract.high.u32 %v294
        %v297 = vmul.u32.u64.compose %v293, %v288
        %v298 = vextract.low.u32 %v297
        %v299 = vextract.high.u32 %v297
        %v300 = vmul.u32 %v293, %v284
        %v301 = vadd.s32 %v296, %v298
        %vm302 = vc.u32 %v296, %v298
        %v303 = vadd.s32 %v299, 1
        %v304 = vsel %vm302, %v303, %v299
        %v305 = vadd.s32 %v300, %v304
        %v306 = vadd.s32 %v305, 536870912
        %v307 = vshrl.u32 %v306, 30
        %v308 = vshll.u32 %v307, 30
        %v309 = vsub.s32 %v305, %v308
        %vm310 = vcmp.lt.s32.totalorder %v309, 0
        %v311 = vsub.s32 0, %v309
        %v312 = vsel %vm310, %v311, %v309
        %v313 = vclz %v312
        %v314 = vsub.s32 %v313, 2
        %vm315 = vcmp.gt.s32.totalorder 0, %v314
        %v316 = vsel %vm315, 0, %v314
        %v317 = vsub.s32 32, %v316
        %v318 = vshll.u32 %v309, %v316
        %v319 = vshrl.u32 %v301, %v317
        %v320 = vor.u32 %v318, %v319
        %v321 = vsub.s32 4294967266, %v316
        %v322 = vadd.s32 %v321, 127
        %v323 = vshll.u32 %v322, 23
        %v324 = vor.u32 4788187, %v323
        %v325 = vand.u32 2147483647, %v324
        %v327 = vcvt.s32.f32 %v320
        %v328 = vmul.f32 %v327, %v325
        %v329 = vxor.u32 %v328, 2147483648
        %v330 = vsel %vm247, %v329, %v328
        %v331 = vsub.s32 4, %v307
        %v332 = vsel %vm247, %v331, %v307
        %v333 = vsel %vm246, %v241, %v330
        %v334 = vsel %vm246, 0, %v332
        %v335 = vcosq.f32.pop %v333
        %v336 = vsinq.f32.pop %v333
        %vm337 = vweird.f32 %v241
        %v338 = vand.u32 %v334, 3
        %vm339 = vcmp.lt.s32.totalorder %v338, 2
        %vm340 = vcmp.eq.s32.totalorder %v338, 0
        %v341 = vxor.u32 %v336, 2147483648
        %v342 = vsel %vm340, %v335, %v341
        %vm343 = vcmp.eq.s32.totalorder %v338, 2
        %v344 = vxor.u32 %v335, 2147483648
        %v345 = vsel %vm343, %v344, %v336
        %v346 = vsel %vm339, %v342, %v345
        %v347 = vsel %vm337, nan, %v346
        %v348 = vand.u32 2147483647, %v242
        %vm349 = vcmp.le.f32.partialorder %v348, 0.7853982
        %vm350 = vcmp.lt.s32.totalorder %v242, 0
        %v351 = vand.u32 %v242, 2139095040
        %v352 = vshrl.u32 %v351, 23
        %v353 = vsub.s32 %v352, 127
        %v354 = vand.u32 2147483647, %v242
        %v355 = vand.u32 %v354, 8388607
        %v356 = vor.u32 %v355, 8388608
        %v357 = vsub.s32 0, %v356
        %v358 = vadd.s32 %v353, 1
        %vm359 = vcmp.gt.s32.totalorder %v358, 0
        %v360 = vsel %vm359, %v358, 0
        %v361 = vshrl.u32 %v360, 5
        %v362 = vand.u32 %v360, 31
        %v363 = vsub.s32 32, %v362
        %v364 = vshrl.u32 683565275, %v363
        %v365 = vshll.u32 683565275, %v362
        %v366 = vshrl.u32 2475754826, %v363
        %v367 = vor.u32 %v365, %v366
        %v368 = vshll.u32 2475754826, %v362
        %v369 = vshrl.u32 2131351028, %v363
        %v370 = vor.u32 %v368, %v369
        %v371 = vshll.u32 2131351028, %v362
        %v372 = vshrl.u32 2102212464, %v363
        %v373 = vor.u32 %v371, %v372
        %v374 = vshll.u32 2102212464, %v362
        %v375 = vshrl.u32 920167782, %v363
        %v376 = vor.u32 %v374, %v375
        %v377 = vshll.u32 920167782, %v362
        %v378 = vshrl.u32 1326507024, %v363
        %v379 = vor.u32 %v377, %v378
        %vm380 = vcmp.lt.s32.totalorder %v361, 1
        %vm381 = vcmp.lt.s32.totalorder %v361, 2
        %vm382 = vcmp.lt.s32.totalorder %v361, 3
        %vm383 = vcmp.lt.s32.totalorder %v361, 4
        %v384 = vsel %vm380, %v364, %v367
        %v385 = vsel %vm383, %v373, 2102212464
        %v386 = vsel %vm382, %v370, %v385
        %v387 = vsel %vm381, %v384, %v386
        %v388 = vsel %vm380, %v367, %v370
        %v389 = vsel %vm383, %v376, 920167782
        %v390 = vsel %vm382, %v373, %v389
        %v391 = vsel %vm381, %v388, %v390
        %v392 = vsel %vm380, %v370, %v373
        %v393 = vsel %vm383, %v379, 1326507024
        %v394 = vsel %vm382, %v376, %v393
        %v395 = vsel %vm381, %v392, %v394
        %v396 = vshll.u32 %v356, 8
        %v397 = vmul.u32.u64.compose %v396, %v395
        %v398 = vextract.low.u32 %v397
        %v399 = vextract.high.u32 %v397
        %v400 = vmul.u32.u64.compose %v396, %v391
        %v401 = vextract.low.u32 %v400
        %v402 = vextract.high.u32 %v400
        %v403 = vmul.u32 %v396, %v387
        %v404 = vadd.s32 %v399, %v401
        %vm405 = vc.u32 %v399, %v401
        %v406 = vadd.s32 %v402, 1
        %v407 = vsel %vm405, %v406, %v402
        %v408 = vadd.s32 %v403, %v407
        %v409 = vadd.s32 %v408, 536870912
        %v410 = vshrl.u32 %v409, 30
        %v411 = vshll.u32 %v410, 30
        %v412 = vsub.s32 %v408, %v411
        %vm413 = vcmp.lt.s32.totalorder %v412, 0
        %v414 = vsub.s32 0, %v412
        %v415 = vsel %vm413, %v414, %v412
        %v416 = vclz %v415
        %v417 = vsub.s32 %v416, 2
        %vm418 = vcmp.gt.s32.totalorder 0, %v417
        %v419 = vsel %vm418, 0, %v417
        %v420 = vsub.s32 32, %v419
        %v421 = vshll.u32 %v412, %v419
        %v422 = vshrl.u32 %v404, %v420
        %v423 = vor.u32 %v421, %v422
        %v424 = vsub.s32 4294967266, %v419
        %v425 = vadd.s32 %v424, 127
        %v426 = vshll.u32 %v425, 23
        %v427 = vor.u32 4788187, %v426
        %v428 = vand.u32 2147483647, %v427
        %v430 = vcvt.s32.f32 %v423
        %v431 = vmul.f32 %v430, %v428
        %v432 = vxor.u32 %v431, 2147483648
        %v433 = vsel %vm350, %v432, %v431
        %v434 = vsub.s32 4, %v410
        %v435 = vsel %vm350, %v434, %v410
        %v436 = vsel %vm349, %v242, %v433
        %v437 = vsel %vm349, 0, %v435
        %v438 = vcosq.f32.pop %v436
        %v439 = vsinq.f32.pop %v436
        %vm440 = vweird.f32 %v242
        %v441 = vand.u32 %v437, 3
        %vm442 = vcmp.lt.s32.totalorder %v441, 2
        %vm443 = vcmp.eq.s32.totalorder %v441, 0
        %v444 = vxor.u32 %v439, 2147483648
        %v445 = vsel %vm443, %v438, %v444
        %vm446 = vcmp.eq.s32.totalorder %v441, 2
        %v447 = vxor.u32 %v438, 2147483648
        %v448 = vsel %vm446, %v447, %v439
        %v449 = vsel %vm442, %v445, %v448
        %v450 = vsel %vm440, nan, %v449
        %v451 = vand.u32 2147483647, %v243
        %vm452 = vcmp.le.f32.partialorder %v451, 0.7853982
        %vm453 = vcmp.lt.s32.totalorder %v243, 0
        %v454 = vand.u32 %v243, 2139095040
        %v455 = vshrl.u32 %v454, 23
        %v456 = vsub.s32 %v455, 127
        %v457 = vand.u32 2147483647, %v243
        %v458 = vand.u32 %v457, 8388607
        %v459 = vor.u32 %v458, 8388608
        %v460 = vsub.s32 0, %v459
        %v461 = vadd.s32 %v456, 1
        %vm462 = vcmp.gt.s32.totalorder %v461, 0
        %v463 = vsel %vm462, %v461, 0
        %v464 = vshrl.u32 %v463, 5
        %v465 = vand.u32 %v463, 31
        %v466 = vsub.s32 32, %v465
        %v467 = vshrl.u32 683565275, %v466
        %v468 = vshll.u32 683565275, %v465
        %v469 = vshrl.u32 2475754826, %v466
        %v470 = vor.u32 %v468, %v469
        %v471 = vshll.u32 2475754826, %v465
        %v472 = vshrl.u32 2131351028, %v466
        %v473 = vor.u32 %v471, %v472
        %v474 = vshll.u32 2131351028, %v465
        %v475 = vshrl.u32 2102212464, %v466
        %v476 = vor.u32 %v474, %v475
        %v477 = vshll.u32 2102212464, %v465
        %v478 = vshrl.u32 920167782, %v466
        %v479 = vor.u32 %v477, %v478
        %v480 = vshll.u32 920167782, %v465
        %v481 = vshrl.u32 1326507024, %v466
        %v482 = vor.u32 %v480, %v481
        %vm483 = vcmp.lt.s32.totalorder %v464, 1
        %vm484 = vcmp.lt.s32.totalorder %v464, 2
        %vm485 = vcmp.lt.s32.totalorder %v464, 3
        %vm486 = vcmp.lt.s32.totalorder %v464, 4
        %v487 = vsel %vm483, %v467, %v470
        %v488 = vsel %vm486, %v476, 2102212464
        %v489 = vsel %vm485, %v473, %v488
        %v490 = vsel %vm484, %v487, %v489
        %v491 = vsel %vm483, %v470, %v473
        %v492 = vsel %vm486, %v479, 920167782
        %v493 = vsel %vm485, %v476, %v492
        %v494 = vsel %vm484, %v491, %v493
        %v495 = vsel %vm483, %v473, %v476
        %v496 = vsel %vm486, %v482, 1326507024
        %v497 = vsel %vm485, %v479, %v496
        %v498 = vsel %vm484, %v495, %v497
        %v499 = vshll.u32 %v459, 8
        %v500 = vmul.u32.u64.compose %v499, %v498
        %v501 = vextract.low.u32 %v500
        %v502 = vextract.high.u32 %v500
        %v503 = vmul.u32.u64.compose %v499, %v494
        %v504 = vextract.low.u32 %v503
        %v505 = vextract.high.u32 %v503
        %v506 = vmul.u32 %v499, %v490
        %v507 = vadd.s32 %v502, %v504
        %vm508 = vc.u32 %v502, %v504
        %v509 = vadd.s32 %v505, 1
        %v510 = vsel %vm508, %v509, %v505
        %v511 = vadd.s32 %v506, %v510
        %v512 = vadd.s32 %v511, 536870912
        %v513 = vshrl.u32 %v512, 30
        %v514 = vshll.u32 %v513, 30
        %v515 = vsub.s32 %v511, %v514
        %vm516 = vcmp.lt.s32.totalorder %v515, 0
        %v517 = vsub.s32 0, %v515
        %v518 = vsel %vm516, %v517, %v515
        %v519 = vclz %v518
        %v520 = vsub.s32 %v519, 2
        %vm521 = vcmp.gt.s32.totalorder 0, %v520
        %v522 = vsel %vm521, 0, %v520
        %v523 = vsub.s32 32, %v522
        %v524 = vshll.u32 %v515, %v522
        %v525 = vshrl.u32 %v507, %v523
        %v526 = vor.u32 %v524, %v525
        %v527 = vsub.s32 4294967266, %v522
        %v528 = vadd.s32 %v527, 127
        %v529 = vshll.u32 %v528, 23
        %v530 = vor.u32 4788187, %v529
        %v531 = vand.u32 2147483647, %v530
        %v533 = vcvt.s32.f32 %v526
        %v534 = vmul.f32 %v533, %v531
        %v535 = vxor.u32 %v534, 2147483648
        %v536 = vsel %vm453, %v535, %v534
        %v537 = vsub.s32 4, %v513
        %v538 = vsel %vm453, %v537, %v513
        %v539 = vsel %vm452, %v243, %v536
        %v540 = vsel %vm452, 0, %v538
        %v541 = vcosq.f32.pop %v539
        %v542 = vsinq.f32.pop %v539
        %vm543 = vweird.f32 %v243
        %v544 = vand.u32 %v540, 3
        %vm545 = vcmp.lt.s32.totalorder %v544, 2
        %vm546 = vcmp.eq.s32.totalorder %v544, 0
        %v547 = vxor.u32 %v542, 2147483648
        %v548 = vsel %vm546, %v541, %v547
        %vm549 = vcmp.eq.s32.totalorder %v544, 2
        %v550 = vxor.u32 %v541, 2147483648
        %v551 = vsel %vm549, %v550, %v542
        %v552 = vsel %vm545, %v548, %v551
        %v553 = vsel %vm543, nan, %v552
        %v554 = vand.u32 2147483647, %v244
        %vm555 = vcmp.le.f32.partialorder %v554, 0.7853982
        %vm556 = vcmp.lt.s32.totalorder %v244, 0
        %v557 = vand.u32 %v244, 2139095040
        %v558 = vshrl.u32 %v557, 23
        %v559 = vsub.s32 %v558, 127
        %v560 = vand.u32 2147483647, %v244
        %v561 = vand.u32 %v560, 8388607
        %v562 = vor.u32 %v561, 8388608
        %v563 = vsub.s32 0, %v562
        %v564 = vadd.s32 %v559, 1
        %vm565 = vcmp.gt.s32.totalorder %v564, 0
        %v566 = vsel %vm565, %v564, 0
        %v567 = vshrl.u32 %v566, 5
        %v568 = vand.u32 %v566, 31
        %v569 = vsub.s32 32, %v568
        %v570 = vshrl.u32 683565275, %v569
        %v571 = vshll.u32 683565275, %v568
        %v572 = vshrl.u32 2475754826, %v569
        %v573 = vor.u32 %v571, %v572
        %v574 = vshll.u32 2475754826, %v568
        %v575 = vshrl.u32 2131351028, %v569
        %v576 = vor.u32 %v574, %v575
        %v577 = vshll.u32 2131351028, %v568
        %v578 = vshrl.u32 2102212464, %v569
        %v579 = vor.u32 %v577, %v578
        %v580 = vshll.u32 2102212464, %v568
        %v581 = vshrl.u32 920167782, %v569
        %v582 = vor.u32 %v580, %v581
        %v583 = vshll.u32 920167782, %v568
        %v584 = vshrl.u32 1326507024, %v569
        %v585 = vor.u32 %v583, %v584
        %vm586 = vcmp.lt.s32.totalorder %v567, 1
        %vm587 = vcmp.lt.s32.totalorder %v567, 2
        %vm588 = vcmp.lt.s32.totalorder %v567, 3
        %vm589 = vcmp.lt.s32.totalorder %v567, 4
        %v590 = vsel %vm586, %v570, %v573
        %v591 = vsel %vm589, %v579, 2102212464
        %v592 = vsel %vm588, %v576, %v591
        %v593 = vsel %vm587, %v590, %v592
        %v594 = vsel %vm586, %v573, %v576
        %v595 = vsel %vm589, %v582, 920167782
        %v596 = vsel %vm588, %v579, %v595
        %v597 = vsel %vm587, %v594, %v596
        %v598 = vsel %vm586, %v576, %v579
        %v599 = vsel %vm589, %v585, 1326507024
        %v600 = vsel %vm588, %v582, %v599
        %v601 = vsel %vm587, %v598, %v600
        %v602 = vshll.u32 %v562, 8
        %v603 = vmul.u32.u64.compose %v602, %v601
        %v604 = vextract.low.u32 %v603
        %v605 = vextract.high.u32 %v603
        %v606 = vmul.u32.u64.compose %v602, %v597
        %v607 = vextract.low.u32 %v606
        %v608 = vextract.high.u32 %v606
        %v609 = vmul.u32 %v602, %v593
        %v610 = vadd.s32 %v605, %v607
        %vm611 = vc.u32 %v605, %v607
        %v612 = vadd.s32 %v608, 1
        %v613 = vsel %vm611, %v612, %v608
        %v614 = vadd.s32 %v609, %v613
        %v615 = vadd.s32 %v614, 536870912
        %v616 = vshrl.u32 %v615, 30
        %v617 = vshll.u32 %v616, 30
        %v618 = vsub.s32 %v614, %v617
        %vm619 = vcmp.lt.s32.totalorder %v618, 0
        %v620 = vsub.s32 0, %v618
        %v621 = vsel %vm619, %v620, %v618
        %v622 = vclz %v621
        %v623 = vsub.s32 %v622, 2
        %vm624 = vcmp.gt.s32.totalorder 0, %v623
        %v625 = vsel %vm624, 0, %v623
        %v626 = vsub.s32 32, %v625
        %v627 = vshll.u32 %v618, %v625
        %v628 = vshrl.u32 %v610, %v626
        %v629 = vor.u32 %v627, %v628
        %v630 = vsub.s32 4294967266, %v625
        %v631 = vadd.s32 %v630, 127
        %v632 = vshll.u32 %v631, 23
        %v633 = vor.u32 4788187, %v632
        %v634 = vand.u32 2147483647, %v633
        %v636 = vcvt.s32.f32 %v629
        %v637 = vmul.f32 %v636, %v634
        %v638 = vxor.u32 %v637, 2147483648
        %v639 = vsel %vm556, %v638, %v637
        %v640 = vsub.s32 4, %v616
        %v641 = vsel %vm556, %v640, %v616
        %v642 = vsel %vm555, %v244, %v639
        %v643 = vsel %vm555, 0, %v641
        %v644 = vcosq.f32.pop %v642
        %v645 = vsinq.f32.pop %v642
        %vm646 = vweird.f32 %v244
        %v647 = vand.u32 %v643, 3
        %vm648 = vcmp.lt.s32.totalorder %v647, 2
        %vm649 = vcmp.eq.s32.totalorder %v647, 0
        %v650 = vxor.u32 %v645, 2147483648
        %v651 = vsel %vm649, %v644, %v650
        %vm652 = vcmp.eq.s32.totalorder %v647, 2
        %v653 = vxor.u32 %v644, 2147483648
        %v654 = vsel %vm652, %v653, %v645
        %v655 = vsel %vm648, %v651, %v654
        %v656 = vsel %vm646, nan, %v655
        %v657 = vld [vmem:[%s3] sm:$0x1]
        %v659 = vlaneseq
        %v660 = vshrl.u32 %v659, 7
        %v661 = vsub.s32 0, %v660
        %v662 = vrot.slane %v657, %v661
        %v664 = vmul.f32 %v347, %v662
        %v665 = vmul.f32 %v450, %v662
        %v666 = vmul.f32 %v553, %v662
        %v667 = vmul.f32 %v656, %v662
        %668 = vst [vmem:[%s191] sm:$0xff] %v664
        %669 = vst [vmem:[%s191 + $0x8] sm:$0xff] %v665
        %670 = vst [vmem:[%s191 + $0x10] sm:$0xff] %v666
        %671 = vst [vmem:[%s191 + $0x18] sm:$0xff] %v667
        %s672 = sand.u32 %s115, 1
        %s673 = scalar_lea.sflag [#allocation3], %s672
        %s674 = sand.u32 %s115, 1
        %s675 = smul.addr %s674, 32
        %s676 = scalar_lea.vmem [#allocation2], %s675
        // Predicated region
        $region37: #{sinusoidal_time_embedding.1} parent=35 // pred_check
          %p677 = pneg %p125
        $region38: #{sinusoidal_time_embedding.1} parent=35 // pred_check_branch
          %679 = sbr.rel (%p677) target = $region40
        $region39: #{sinusoidal_time_embedding.1} parent=35 // pred_region
          %s680 = smul.u32 4, %s18
          %s682 = ssub.s32 512, 512
          %683 = vsyncadd %s673, %s682
          %s684 = smul.addr %s680, 128
          %s685 = scalar_lea.hbm %s4, %s684
          %s686 = sshll.u32 %s676, 4
          %s687 = int_to_ptr.vmem [resolvable:$true] %s686
          %692 = dma.vmem_to_hbm [thread:$0]  %s687, 512, %s685, %s673, 128, 128, 8
        $region40: #{sinusoidal_time_embedding.1} parent=35 // pred_fallthru
          _
      $region36: #{sinusoidal_time_embedding.1} parent=5 // pred_fallthru
        _
      %p693 = scmp.le.s32.totalorder 2, %s13
      // Predicated region
      $region41: #{sinusoidal_time_embedding.1} parent=5 // pred_check
        %p694 = pneg %p693
      $region42: #{sinusoidal_time_embedding.1} parent=5 // pred_check_branch
        %696 = sbr.rel (%p694) target = $region44
      $region43: #{sinusoidal_time_embedding.1} parent=5 // pred_region
        %s697 = ssub.s32 %s13, 2
        // Predicated region
        $region45: #{sinusoidal_time_embedding.1} parent=43 // pred_check
          %p698 = pneg %p131
        $region46: #{sinusoidal_time_embedding.1} parent=43 // pred_check_branch
          %700 = sbr.rel (%p698) target = $region48
        $region47: #{sinusoidal_time_embedding.1} parent=43 // pred_region
          %s701 = sand.u32 %s116, 1
          %s702 = scalar_lea.sflag [#allocation3], %s701
          %s703 = sand.u32 %s116, 1
          %s704 = smul.addr %s703, 32
          %s705 = scalar_lea.vmem [#allocation2], %s704
          %706 = dma.done %s702, 512
        $region48: #{sinusoidal_time_embedding.1} parent=43 // pred_fallthru
          _
      $region44: #{sinusoidal_time_embedding.1} parent=5 // pred_fallthru
        _
    $region6: #{sinusoidal_time_embedding.1} parent=1 // loop_footer
      %s17 = sadd.s32 1, %s13
    $region7: #{sinusoidal_time_embedding.1} parent=1 // loop_footer_branch
      %12 = sbr.rel target = $region3
    $region8: #{sinusoidal_time_embedding.1} parent=1 // loop_exit
      _
    %707 = vsyncpa [#allocation3], 1
    %s708 = scalar_lea.sflag [#allocation3], 1
    %709 = vsyncpa %s708, 1

</llo_original>
